<compile_context>
chip_gen: v5e
topology: v5e:2x2
jax: 0.10.0
libtpu: 0.0.40
codegen_flags: <defaults>
</compile_context>

<pallas_src>
import functools

import jax
import jax.numpy as jnp
from jax import lax
from jax.experimental import pallas as pl
from jax.experimental.pallas import tpu as pltpu

BN_EPS = 1e-5  # nn.BatchNorm1d default eps


# ---------------------------------------------------------------------------
# Fully fused single-tile kernel (whole batch resident in VMEM).
# ---------------------------------------------------------------------------
def _fused_actor_kernel(x_ref, w1_ref, b1_ref, gamma_ref, beta_ref,
                        w2_ref, b2_ref, w3_ref, b3_ref, out_ref, *, batch):
    # fc1 + ReLU on the MXU (bf16 operands, f32 accumulation).
    h1 = jnp.dot(x_ref[...], w1_ref[...], preferred_element_type=jnp.float32)
    h1 = jnp.maximum(h1 + b1_ref[...], 0.0)

    # Train-mode BatchNorm1d over the batch axis (biased variance, like PyTorch).
    inv_n = 1.0 / batch
    mean = jnp.sum(h1, axis=0, keepdims=True) * inv_n
    var = jnp.maximum(jnp.sum(h1 * h1, axis=0, keepdims=True) * inv_n - mean * mean, 0.0)
    scale = gamma_ref[...] * lax.rsqrt(var + BN_EPS)
    shift = beta_ref[...] - mean * scale
    h1 = (h1 * scale + shift).astype(jnp.bfloat16)

    # fc2 + ReLU
    h2 = jnp.dot(h1, w2_ref[...], preferred_element_type=jnp.float32)
    h2 = jnp.maximum(h2 + b2_ref[...], 0.0).astype(jnp.bfloat16)

    # fc3 + tanh
    h3 = jnp.dot(h2, w3_ref[...], preferred_element_type=jnp.float32) + b3_ref[...]
    out_ref[...] = jnp.tanh(h3).astype(out_ref.dtype)


# ---------------------------------------------------------------------------
# Large-batch pass 1: batch statistics -> folded BN scale/shift ([1, H1] each).
# Batch grid axis is a reduction into the (resident) outputs => "arbitrary".
# ---------------------------------------------------------------------------
def _bn_stats_kernel(x_ref, w1_ref, b1_ref, gamma_ref, beta_ref,
                     scale_ref, shift_ref, *, batch, tile_b):
    i = pl.program_id(0)
    nt = pl.num_programs(0)

    @pl.when(i == 0)
    def _():
        scale_ref[...] = jnp.zeros_like(scale_ref)   # running sum(h1)
        shift_ref[...] = jnp.zeros_like(shift_ref)   # running sum(h1*h1)

    # fc1 + ReLU on the MXU.
    h1 = jnp.dot(x_ref[...], w1_ref[...], preferred_element_type=jnp.float32)
    h1 = jnp.maximum(h1 + b1_ref[...], 0.0)

    # Zero rows of a (possibly) partial last tile so they don't pollute the stats.
    if batch % tile_b != 0:
        row = lax.broadcasted_iota(jnp.int32, h1.shape, 0) + i * tile_b
        h1 = jnp.where(row < batch, h1, 0.0)

    scale_ref[...] += jnp.sum(h1, axis=0, keepdims=True)
    shift_ref[...] += jnp.sum(h1 * h1, axis=0, keepdims=True)

    # Finalize: turn (sum, sumsq) into the folded BN affine (scale, shift).
    @pl.when(i == nt - 1)
    def _():
        inv_n = 1.0 / batch                 # biased variance, like torch train-mode BN
        mean = scale_ref[...] * inv_n
        var = jnp.maximum(shift_ref[...] * inv_n - mean * mean, 0.0)
        scale = gamma_ref[...] * lax.rsqrt(var + BN_EPS)
        scale_ref[...] = scale
        shift_ref[...] = beta_ref[...] - mean * scale


# ---------------------------------------------------------------------------
# Large-batch pass 2: fused forward per batch tile. Tiles are independent
# (BN already folded), so the batch axis can be "parallel" (megacore).
# ---------------------------------------------------------------------------
def _forward_kernel(x_ref, w1_ref, b1_ref, scale_ref, shift_ref,
                    w2_ref, b2_ref, w3_ref, b3_ref, out_ref):
    h1 = jnp.dot(x_ref[...], w1_ref[...], preferred_element_type=jnp.float32)
    h1 = jnp.maximum(h1 + b1_ref[...], 0.0)
    h1 = (h1 * scale_ref[...] + shift_ref[...]).astype(jnp.bfloat16)
    h2 = jnp.dot(h1, w2_ref[...], preferred_element_type=jnp.float32)
    h2 = jnp.maximum(h2 + b2_ref[...], 0.0).astype(jnp.bfloat16)
    h3 = jnp.dot(h2, w3_ref[...], preferred_element_type=jnp.float32) + b3_ref[...]
    out_ref[...] = jnp.tanh(h3).astype(out_ref.dtype)


# ---------------------------------------------------------------------------
# Parameter prep (done ONCE, not per forward call): transpose weights to
# [in, out] bf16 for x @ W on the MXU; biases / gamma / beta as [1, F] f32 rows.
# ---------------------------------------------------------------------------
def prepare_actor_params(params):
    return {
        "w1": params["w1"].T.astype(jnp.bfloat16),
        "w2": params["w2"].T.astype(jnp.bfloat16),
        "w3": params["w3"].T.astype(jnp.bfloat16),
        "b1": params["b1"].reshape(1, -1).astype(jnp.float32),
        "b2": params["b2"].reshape(1, -1).astype(jnp.float32),
        "b3": params["b3"].reshape(1, -1).astype(jnp.float32),
        "gamma": params["gamma"].reshape(1, -1).astype(jnp.float32),
        "beta": params["beta"].reshape(1, -1).astype(jnp.float32),
    }


def actor_forward(states, prepped, *, tile_b=1024):
    """states: [B, state_size] (or [state_size]). prepped: output of prepare_actor_params."""
    if states.ndim == 1:
        states = states[None, :]  # matches torch.unsqueeze(states, 0)
        # Note: train-mode BN with batch=1 gives var=0 (PyTorch would raise here).
    B, S = states.shape
    H1 = prepped["w1"].shape[1]
    H2 = prepped["w2"].shape[1]
    A = prepped["w3"].shape[1]

    x = states.astype(jnp.bfloat16)
    full = lambda i: (0, 0)

    # ---- fast path: whole batch fits in one VMEM tile -> single fused kernel ----
    if B <= tile_b:
        return pl.pallas_call(
            functools.partial(_fused_actor_kernel, batch=B),
            out_shape=jax.ShapeDtypeStruct((B, A), jnp.float32),
            grid=(1,),
            in_specs=[pl.BlockSpec((B, S), full),
                      pl.BlockSpec((S, H1), full),
                      pl.BlockSpec((1, H1), full),
                      pl.BlockSpec((1, H1), full),
                      pl.BlockSpec((1, H1), full),
                      pl.BlockSpec((H1, H2), full),
                      pl.BlockSpec((1, H2), full),
                      pl.BlockSpec((H2, A), full),
                      pl.BlockSpec((1, A), full)],
            out_specs=pl.BlockSpec((B, A), full),
            compiler_params=pltpu.CompilerParams(
                dimension_semantics=("arbitrary",)),
        )(x, prepped["w1"], prepped["b1"], prepped["gamma"], prepped["beta"],
          prepped["w2"], prepped["b2"], prepped["w3"], prepped["b3"])

    # ---- large-batch path: two tiled passes -------------------------------------
    # Batch tile of 1024 rows: bf16 input tile ~48 KiB + f32 out tile, double
    # buffered -> far below the 16/32 MiB scoped-VMEM defaults on v5e/v6e/v7x.
    tb = tile_b
    nt = pl.cdiv(B, tb)
    row = lambda i: (i, 0)
    const = lambda i: (0, 0)   # resident across grid steps (fetched once)

    # pass 1: global BN batch stats -> folded scale/shift
    scale, shift = pl.pallas_call(
        functools.partial(_bn_stats_kernel, batch=B, tile_b=tb),
        out_shape=(jax.ShapeDtypeStruct((1, H1), jnp.float32),
                   jax.ShapeDtypeStruct((1, H1), jnp.float32)),
        grid=(nt,),
        in_specs=[pl.BlockSpec((tb, S), row),
                  pl.BlockSpec((S, H1), const),
                  pl.BlockSpec((1, H1), const),
                  pl.BlockSpec((1, H1), const),
                  pl.BlockSpec((1, H1), const)],
        out_specs=(pl.BlockSpec((1, H1), const),
                   pl.BlockSpec((1, H1), const)),
        compiler_params=pltpu.CompilerParams(dimension_semantics=("arbitrary",)),
    )(x, prepped["w1"], prepped["b1"], prepped["gamma"], prepped["beta"])

    # pass 2: fused fc1+ReLU, folded BN, fc2+ReLU, fc3+tanh
    out = pl.pallas_call(
        _forward_kernel,
        out_shape=jax.ShapeDtypeStruct((B, A), jnp.float32),
        grid=(nt,),
        in_specs=[pl.BlockSpec((tb, S), row),
                  pl.BlockSpec((S, H1), const),
                  pl.BlockSpec((1, H1), const),
                  pl.BlockSpec((1, H1), const),
                  pl.BlockSpec((1, H1), const),
                  pl.BlockSpec((H1, H2), const),
                  pl.BlockSpec((1, H2), const),
                  pl.BlockSpec((H2, A), const),
                  pl.BlockSpec((1, A), const)],
        out_specs=pl.BlockSpec((tb, A), row),
        compiler_params=pltpu.CompilerParams(dimension_semantics=("parallel",)),
    )(x, prepped["w1"], prepped["b1"], scale, shift,
      prepped["w2"], prepped["b2"], prepped["w3"], prepped["b3"])
    return out


# ---------------------------------------------------------------------------
# Synthetic init mirroring the module's reset_parameters ranges (PyTorch layout).
# ---------------------------------------------------------------------------
def init_actor_params(key, state_size, action_size, layer_in_out):
    h1, h2 = layer_in_out
    k = jax.random.split(key, 6)
    lim1 = 1.0 / jnp.sqrt(float(h1))   # hidden_init uses weight.size()[0] = out_features
    lim2 = 1.0 / jnp.sqrt(float(h2))
    return {
        "w1": jax.random.uniform(k[0], (h1, state_size), jnp.float32, -lim1, lim1),
        "b1": jax.random.uniform(k[1], (h1,), jnp.float32, -lim1, lim1),
        "w2": jax.random.uniform(k[2], (h2, h1), jnp.float32, -lim2, lim2),
        "b2": jax.random.uniform(k[3], (h2,), jnp.float32, -lim2, lim2),
        "w3": jax.random.uniform(k[4], (action_size, h2), jnp.float32, -0.003, 0.003),
        "b3": jax.random.uniform(k[5], (action_size,), jnp.float32, -0.003, 0.003),
        "gamma": jnp.ones((h1,), jnp.float32),   # BatchNorm1d affine defaults
        "beta": jnp.zeros((h1,), jnp.float32),
    }


def _reference_forward(states, params):
    """Pure-JAX f32 reference (training-mode BN, biased batch variance)."""
    h1 = jnp.maximum(states @ params["w1"].T + params["b1"], 0.0)
    mean = jnp.mean(h1, axis=0, keepdims=True)
    var = jnp.mean((h1 - mean) ** 2, axis=0, keepdims=True)
    h1 = (h1 - mean) * lax.rsqrt(var + BN_EPS) * params["gamma"] + params["beta"]
    h2 = jnp.maximum(h1 @ params["w2"].T + params["b2"], 0.0)
    return jnp.tanh(h2 @ params["w3"].T + params["b3"])


if __name__ == "__main__":
    key = jax.random.PRNGKey(0)
    state_size, action_size = 24, 4
    layer_in_out = (64, 32)

    kp, kx1, kx2 = jax.random.split(key, 3)
    params = init_actor_params(kp, state_size, action_size, layer_in_out)
    prepped = prepare_actor_params(params)

    # Small batch -> single fully fused kernel path.
    states_small = jax.random.normal(kx1, (8, state_size), jnp.float32)
    out_small = actor_forward(states_small, prepped)
    jax.block_until_ready(out_small)
    assert out_small.shape == (8, action_size)
    ref_small = _reference_forward(states_small, params)
    assert jnp.allclose(out_small, ref_small, atol=5e-2, rtol=5e-2), \
        "fused path mismatch vs pure-JAX reference"

    # Larger batch (with a partial last tile) -> two-pass tiled path.
    states_big = jax.random.normal(kx2, (2500, state_size), jnp.float32)
    out_big = actor_forward(states_big, prepped, tile_b=1024)
    jax.block_until_ready(out_big)
    assert out_big.shape == (2500, action_size)
    ref_big = _reference_forward(states_big, params)
    assert jnp.allclose(out_big, ref_big, atol=5e-2, rtol=5e-2), \
        "tiled path mismatch vs pure-JAX reference"

    # TODO(synk): BatchNorm1d running_mean/running_var tracking (eval-mode inference
    # path) is not implemented; this kernel mirrors the module's training-mode forward.
    print("KERNEL_OK")
</pallas_src>

<mosaic_0001>
module attributes {stable_mosaic.version = 11 : i64} {
  func.func @_fused_actor_kernel(%arg0: i32, %arg1: memref<8x24xbf16, #tpu.memory_space<vmem>>, %arg2: memref<24x64xbf16, #tpu.memory_space<vmem>>, %arg3: memref<1x64xf32, #tpu.memory_space<vmem>>, %arg4: memref<1x64xf32, #tpu.memory_space<vmem>>, %arg5: memref<1x64xf32, #tpu.memory_space<vmem>>, %arg6: memref<64x32xbf16, #tpu.memory_space<vmem>>, %arg7: memref<1x32xf32, #tpu.memory_space<vmem>>, %arg8: memref<32x4xbf16, #tpu.memory_space<vmem>>, %arg9: memref<1x4xf32, #tpu.memory_space<vmem>>, %arg10: memref<8x4xf32, #tpu.memory_space<vmem>>) attributes {dimension_semantics = [#tpu.dimension_semantics<arbitrary>], iteration_bounds = array<i64: 1>, scalar_prefetch = 0 : i64, scratch_operands = 0 : i64, tpu.core_type = #tpu.core_type<tc>, window_params = [{pipeline_mode = #tpu.pipeline_mode<synchronous>, transform_indices = @transform_0, window_bounds = array<i64: 8, 24>}, {pipeline_mode = #tpu.pipeline_mode<synchronous>, transform_indices = @transform_1, window_bounds = array<i64: 24, 64>}, {pipeline_mode = #tpu.pipeline_mode<synchronous>, transform_indices = @transform_2, window_bounds = array<i64: 1, 64>}, {pipeline_mode = #tpu.pipeline_mode<synchronous>, transform_indices = @transform_3, window_bounds = array<i64: 1, 64>}, {pipeline_mode = #tpu.pipeline_mode<synchronous>, transform_indices = @transform_4, window_bounds = array<i64: 1, 64>}, {pipeline_mode = #tpu.pipeline_mode<synchronous>, transform_indices = @transform_5, window_bounds = array<i64: 64, 32>}, {pipeline_mode = #tpu.pipeline_mode<synchronous>, transform_indices = @transform_6, window_bounds = array<i64: 1, 32>}, {pipeline_mode = #tpu.pipeline_mode<synchronous>, transform_indices = @transform_7, window_bounds = array<i64: 32, 4>}, {pipeline_mode = #tpu.pipeline_mode<synchronous>, transform_indices = @transform_8, window_bounds = array<i64: 1, 4>}, {pipeline_mode = #tpu.pipeline_mode<synchronous>, transform_indices = @transform_9, window_bounds = array<i64: 8, 4>}]} {
    %c0 = arith.constant 0 : index
    %c0_0 = arith.constant 0 : index
    %0 = vector.load %arg1[%c0, %c0_0] : memref<8x24xbf16, #tpu.memory_space<vmem>>, vector<8x24xbf16>
    %c0_1 = arith.constant 0 : index
    %c0_2 = arith.constant 0 : index
    %1 = vector.load %arg2[%c0_1, %c0_2] : memref<24x64xbf16, #tpu.memory_space<vmem>>, vector<24x64xbf16>
    %cst = arith.constant dense<0.000000e+00> : vector<8x64xf32>
    %2 = tpu.matmul %0, %1, %cst {dimension_numbers = #tpu.dot_dimension_numbers<[1], [0], [0], [1], [0, 0, 1, 1], [], []>} : vector<8x24xbf16>, vector<24x64xbf16>, vector<8x64xf32> -> vector<8x64xf32>
    %c0_3 = arith.constant 0 : index
    %c0_4 = arith.constant 0 : index
    %3 = vector.load %arg3[%c0_3, %c0_4] : memref<1x64xf32, #tpu.memory_space<vmem>>, vector<1x64xf32>
    %4 = vector.broadcast %3 : vector<1x64xf32> to vector<8x64xf32>
    %5 = arith.addf %2, %4 : vector<8x64xf32>
    %cst_5 = arith.constant 0.000000e+00 : f32
    %6 = vector.broadcast %cst_5 : f32 to vector<8x64xf32>
    %7 = arith.maximumf %5, %6 : vector<8x64xf32>
    %cst_6 = arith.constant dense<0.000000e+00> : vector<64xf32>
    %8 = vector.multi_reduction <add>, %7, %cst_6 [0] : vector<8x64xf32> to vector<64xf32>
    %9 = vector.shape_cast %8 : vector<64xf32> to vector<1x64xf32>
    %cst_7 = arith.constant 1.250000e-01 : f32
    %10 = vector.broadcast %cst_7 : f32 to vector<1x64xf32>
    %11 = arith.mulf %9, %10 : vector<1x64xf32>
    %12 = arith.mulf %7, %7 : vector<8x64xf32>
    %cst_8 = arith.constant dense<0.000000e+00> : vector<64xf32>
    %13 = vector.multi_reduction <add>, %12, %cst_8 [0] : vector<8x64xf32> to vector<64xf32>
    %14 = vector.shape_cast %13 : vector<64xf32> to vector<1x64xf32>
    %cst_9 = arith.constant 1.250000e-01 : f32
    %15 = vector.broadcast %cst_9 : f32 to vector<1x64xf32>
    %16 = arith.mulf %14, %15 : vector<1x64xf32>
    %17 = arith.mulf %11, %11 : vector<1x64xf32>
    %18 = arith.subf %16, %17 : vector<1x64xf32>
    %cst_10 = arith.constant 0.000000e+00 : f32
    %19 = vector.broadcast %cst_10 : f32 to vector<1x64xf32>
    %20 = arith.maximumf %18, %19 : vector<1x64xf32>
    %c0_11 = arith.constant 0 : index
    %c0_12 = arith.constant 0 : index
    %21 = vector.load %arg4[%c0_11, %c0_12] : memref<1x64xf32, #tpu.memory_space<vmem>>, vector<1x64xf32>
    %cst_13 = arith.constant 9.99999974E-6 : f32
    %22 = vector.broadcast %cst_13 : f32 to vector<1x64xf32>
    %23 = arith.addf %20, %22 : vector<1x64xf32>
    %24 = math.rsqrt %23 : vector<1x64xf32>
    %25 = arith.mulf %21, %24 : vector<1x64xf32>
    %c0_14 = arith.constant 0 : index
    %c0_15 = arith.constant 0 : index
    %26 = vector.load %arg5[%c0_14, %c0_15] : memref<1x64xf32, #tpu.memory_space<vmem>>, vector<1x64xf32>
    %27 = arith.mulf %11, %25 : vector<1x64xf32>
    %28 = arith.subf %26, %27 : vector<1x64xf32>
    %29 = vector.broadcast %25 : vector<1x64xf32> to vector<8x64xf32>
    %30 = arith.mulf %7, %29 : vector<8x64xf32>
    %31 = vector.broadcast %28 : vector<1x64xf32> to vector<8x64xf32>
    %32 = arith.addf %30, %31 : vector<8x64xf32>
    %33 = arith.truncf %32 : vector<8x64xf32> to vector<8x64xbf16>
    %c0_16 = arith.constant 0 : index
    %c0_17 = arith.constant 0 : index
    %34 = vector.load %arg6[%c0_16, %c0_17] : memref<64x32xbf16, #tpu.memory_space<vmem>>, vector<64x32xbf16>
    %cst_18 = arith.constant dense<0.000000e+00> : vector<8x32xf32>
    %35 = tpu.matmul %33, %34, %cst_18 {dimension_numbers = #tpu.dot_dimension_numbers<[1], [0], [0], [1], [0, 0, 1, 1], [], []>} : vector<8x64xbf16>, vector<64x32xbf16>, vector<8x32xf32> -> vector<8x32xf32>
    %c0_19 = arith.constant 0 : index
    %c0_20 = arith.constant 0 : index
    %36 = vector.load %arg7[%c0_19, %c0_20] : memref<1x32xf32, #tpu.memory_space<vmem>>, vector<1x32xf32>
    %37 = vector.broadcast %36 : vector<1x32xf32> to vector<8x32xf32>
    %38 = arith.addf %35, %37 : vector<8x32xf32>
    %cst_21 = arith.constant 0.000000e+00 : f32
    %39 = vector.broadcast %cst_21 : f32 to vector<8x32xf32>
    %40 = arith.maximumf %38, %39 : vector<8x32xf32>
    %41 = arith.truncf %40 : vector<8x32xf32> to vector<8x32xbf16>
    %c0_22 = arith.constant 0 : index
    %c0_23 = arith.constant 0 : index
    %42 = vector.load %arg8[%c0_22, %c0_23] : memref<32x4xbf16, #tpu.memory_space<vmem>>, vector<32x4xbf16>
    %cst_24 = arith.constant dense<0.000000e+00> : vector<8x4xf32>
    %43 = tpu.matmul %41, %42, %cst_24 {dimension_numbers = #tpu.dot_dimension_numbers<[1], [0], [0], [1], [0, 0, 1, 1], [], []>} : vector<8x32xbf16>, vector<32x4xbf16>, vector<8x4xf32> -> vector<8x4xf32>
    %c0_25 = arith.constant 0 : index
    %c0_26 = arith.constant 0 : index
    %44 = vector.load %arg9[%c0_25, %c0_26] : memref<1x4xf32, #tpu.memory_space<vmem>>, vector<1x4xf32>
    %45 = vector.broadcast %44 : vector<1x4xf32> to vector<8x4xf32>
    %46 = arith.addf %43, %45 : vector<8x4xf32>
    %47 = math.tanh %46 : vector<8x4xf32>
    %c0_27 = arith.constant 0 : index
    %c0_28 = arith.constant 0 : index
    %48 = vector.load %arg10[%c0_27, %c0_28] : memref<8x4xf32, #tpu.memory_space<vmem>>, vector<8x4xf32>
    tpu.vector_store %arg10[%c0_27, %c0_28], %47 {strides = array<i32>} : memref<8x4xf32, #tpu.memory_space<vmem>>, vector<8x4xf32>,
    return
  }
  func.func @transform_0(%arg0: i32) -> (i32, i32) {
    %c0_i32 = arith.constant 0 : i32
    %c0_i32_0 = arith.constant 0 : i32
    %c0_i32_1 = arith.constant 0 : i32
    return %c0_i32, %c0_i32_0 : i32, i32
  }
  func.func @transform_1(%arg0: i32) -> (i32, i32) {
    %c0_i32 = arith.constant 0 : i32
    %c0_i32_0 = arith.constant 0 : i32
    %c0_i32_1 = arith.constant 0 : i32
    return %c0_i32, %c0_i32_0 : i32, i32
  }
  func.func @transform_2(%arg0: i32) -> (i32, i32) {
    %c0_i32 = arith.constant 0 : i32
    %c0_i32_0 = arith.constant 0 : i32
    %c0_i32_1 = arith.constant 0 : i32
    return %c0_i32, %c0_i32_0 : i32, i32
  }
  func.func @transform_3(%arg0: i32) -> (i32, i32) {
    %c0_i32 = arith.constant 0 : i32
    %c0_i32_0 = arith.constant 0 : i32
    %c0_i32_1 = arith.constant 0 : i32
    return %c0_i32, %c0_i32_0 : i32, i32
  }
  func.func @transform_4(%arg0: i32) -> (i32, i32) {
    %c0_i32 = arith.constant 0 : i32
    %c0_i32_0 = arith.constant 0 : i32
    %c0_i32_1 = arith.constant 0 : i32
    return %c0_i32, %c0_i32_0 : i32, i32
  }
  func.func @transform_5(%arg0: i32) -> (i32, i32) {
    %c0_i32 = arith.constant 0 : i32
    %c0_i32_0 = arith.constant 0 : i32
    %c0_i32_1 = arith.constant 0 : i32
    return %c0_i32, %c0_i32_0 : i32, i32
  }
  func.func @transform_6(%arg0: i32) -> (i32, i32) {
    %c0_i32 = arith.constant 0 : i32
    %c0_i32_0 = arith.constant 0 : i32
    %c0_i32_1 = arith.constant 0 : i32
    return %c0_i32, %c0_i32_0 : i32, i32
  }
  func.func @transform_7(%arg0: i32) -> (i32, i32) {
    %c0_i32 = arith.constant 0 : i32
    %c0_i32_0 = arith.constant 0 : i32
    %c0_i32_1 = arith.constant 0 : i32
    return %c0_i32, %c0_i32_0 : i32, i32
  }
  func.func @transform_8(%arg0: i32) -> (i32, i32) {
    %c0_i32 = arith.constant 0 : i32
    %c0_i32_0 = arith.constant 0 : i32
    %c0_i32_1 = arith.constant 0 : i32
    return %c0_i32, %c0_i32_0 : i32, i32
  }
  func.func @transform_9(%arg0: i32) -> (i32, i32) {
    %c0_i32 = arith.constant 0 : i32
    %c0_i32_0 = arith.constant 0 : i32
    %c0_i32_1 = arith.constant 0 : i32
    return %c0_i32, %c0_i32_0 : i32, i32
  }
}

</mosaic_0001>

<llo_original>
// kernel: tpu_custom_call.1
$region0: #{tpu_custom_call.1}
  #allocation0 [shape = 'u32[]', space=smem, size = 0x4, offset = 0x4, fixed_abs, tag = 'smem constant byte address 0x4 - core index']
  #allocation1 [shape = 'u32[72,128]{1,0:T(1,128)}', space=vmem, size = 0x9000, scoped, tag = 'internal scratch']
  %s0 = inlined_call_operand.vmem [shape: bf16[8,24], index: 0, kind: input, shape index: {}]
  %s1 = inlined_call_operand.vmem [shape: bf16[24,64], index: 1, kind: input, shape index: {}]
  %s2 = inlined_call_operand.vmem [shape: f32[1,64], index: 2, kind: input, shape index: {}]
  %s3 = inlined_call_operand.vmem [shape: f32[1,64], index: 3, kind: input, shape index: {}]
  %s4 = inlined_call_operand.vmem [shape: f32[1,64], index: 4, kind: input, shape index: {}]
  %s5 = inlined_call_operand.vmem [shape: bf16[64,32], index: 5, kind: input, shape index: {}]
  %s6 = inlined_call_operand.vmem [shape: f32[1,32], index: 6, kind: input, shape index: {}]
  %s7 = inlined_call_operand.vmem [shape: bf16[32,4], index: 7, kind: input, shape index: {}]
  %s8 = inlined_call_operand.vmem [shape: f32[1,4], index: 8, kind: input, shape index: {}]
  %s9 = inlined_call_operand.vmem [shape: f32[8,4], index: 9, kind: output, shape index: {}]
  %s10 = sld [smem:[#allocation0]]
  $region46: #{tpu_custom_call.1} parent=0
    _
  %s12 = ssub.s32 1, %s10
  %s13 = scalar_select 0, %s12, %s10
  // Predicated region
  $region2: #{tpu_custom_call.1} parent=0 // pred_check
    _
  $region3: #{tpu_custom_call.1} parent=0 // pred_check_branch
    %15 = sbr.rel (0) target = $region5
  $region4: #{tpu_custom_call.1} parent=0 // pred_region
    _
  $region5: #{tpu_custom_call.1} parent=0 // pred_fallthru
    _
  // Predicated region
  $region6: #{tpu_custom_call.1} parent=0 // pred_check
    _
  $region7: #{tpu_custom_call.1} parent=0 // pred_check_branch
    %17 = sbr.rel (0) target = $region9
  $region8: #{tpu_custom_call.1} parent=0 // pred_region
    _
  $region9: #{tpu_custom_call.1} parent=0 // pred_fallthru
    _
  // Predicated region
  $region10: #{tpu_custom_call.1} parent=0 // pred_check
    _
  $region11: #{tpu_custom_call.1} parent=0 // pred_check_branch
    %19 = sbr.rel (0) target = $region13
  $region12: #{tpu_custom_call.1} parent=0 // pred_region
    _
  $region13: #{tpu_custom_call.1} parent=0 // pred_fallthru
    _
  // Predicated region
  $region14: #{tpu_custom_call.1} parent=0 // pred_check
    _
  $region15: #{tpu_custom_call.1} parent=0 // pred_check_branch
    %21 = sbr.rel (0) target = $region17
  $region16: #{tpu_custom_call.1} parent=0 // pred_region
    _
  $region17: #{tpu_custom_call.1} parent=0 // pred_fallthru
    _
  // Predicated region
  $region18: #{tpu_custom_call.1} parent=0 // pred_check
    _
  $region19: #{tpu_custom_call.1} parent=0 // pred_check_branch
    %23 = sbr.rel (0) target = $region21
  $region20: #{tpu_custom_call.1} parent=0 // pred_region
    _
  $region21: #{tpu_custom_call.1} parent=0 // pred_fallthru
    _
  // Predicated region
  $region22: #{tpu_custom_call.1} parent=0 // pred_check
    _
  $region23: #{tpu_custom_call.1} parent=0 // pred_check_branch
    %25 = sbr.rel (0) target = $region25
  $region24: #{tpu_custom_call.1} parent=0 // pred_region
    _
  $region25: #{tpu_custom_call.1} parent=0 // pred_fallthru
    _
  // Predicated region
  $region26: #{tpu_custom_call.1} parent=0 // pred_check
    _
  $region27: #{tpu_custom_call.1} parent=0 // pred_check_branch
    %27 = sbr.rel (0) target = $region29
  $region28: #{tpu_custom_call.1} parent=0 // pred_region
    _
  $region29: #{tpu_custom_call.1} parent=0 // pred_fallthru
    _
  // Predicated region
  $region30: #{tpu_custom_call.1} parent=0 // pred_check
    _
  $region31: #{tpu_custom_call.1} parent=0 // pred_check_branch
    %29 = sbr.rel (0) target = $region33
  $region32: #{tpu_custom_call.1} parent=0 // pred_region
    _
  $region33: #{tpu_custom_call.1} parent=0 // pred_fallthru
    _
  // Predicated region
  $region34: #{tpu_custom_call.1} parent=0 // pred_check
    _
  $region35: #{tpu_custom_call.1} parent=0 // pred_check_branch
    %31 = sbr.rel (0) target = $region37
  $region36: #{tpu_custom_call.1} parent=0 // pred_region
    _
  $region37: #{tpu_custom_call.1} parent=0 // pred_fallthru
    _
  %v33 = vld [vmem:[%s0] sm:$0xf]
  %v34 = vld [vmem:[%s1] sm:$0xf]
  %v35 = vld [vmem:[%s1 + $0x4] sm:$0xf]
  %v36 = vld [vmem:[%s1 + $0x8] sm:$0xf]
  %v37 = vld [vmem:[%s2] sm:$0x1]
  %v39 = vperm.slane %v37, 0
  %v44 = vunpack.c.l.b16 %v34
  %v45 = vunpack.c.l.b16 %v35
  %v46 = vunpack.c.l.b16 %v36
  %v47 = vpack.c.b16 %v45, %v44
  %v48 = vpack.c.b16 %v46, %v46
  %vm50 = vcmask 195584
  %v52 = vsel %vm50, %v33, 0
  %vm54 = vcmask 1043456
  %v56 = vsel %vm54, %v48, 0
  %58 = vmatpush.bf16.msra.mxu0 0
  %59 = vmatpush.bf16.msra.mxu0 0
  %60 = vmatpush.bf16.msra.mxu0 0
  %61 = vmatpush.bf16.msra.mxu0 0
  %62 = vmatpush.bf16.msra.mxu0 0
  %63 = vmatpush.bf16.msra.mxu0 0
  %64 = vmatpush.bf16.msra.mxu0 %v56
  %65 = vmatpush.bf16.msra.mxu0 %v47
  %66 = vmatmul.bf16.gmra.mxu0 %v52
  %v67 = vpop.f32.mrf.mxu0
  %v68 = vadd.f32 %v39, %v67
  %v69 = vpop.f32.mrf.mxu0
  %70 = vdwg.mxu0
  %v71 = vmax.f32 %v68, 0.0
  %vm72 = vcmask 523264
  %v73 = vsel %vm72, %v71, 0.0
  %v74 = vrot.slane %v73, 4
  %v75 = vadd.f32 %v73, %v74
  %v76 = vrot.slane %v75, 2
  %v77 = vadd.f32 %v75, %v76
  %v78 = vrot.slane %v77, 1
  %v79 = vadd.f32 %v77, %v78
  %v80 = vmul.f32 %v79, 0.125
  %v81 = vmul.f32 %v71, %v71
  %v82 = vsel %vm72, %v81, 0.0
  %v83 = vrot.slane %v82, 4
  %v84 = vadd.f32 %v82, %v83
  %v85 = vrot.slane %v84, 2
  %v86 = vadd.f32 %v84, %v85
  %v87 = vrot.slane %v86, 1
  %v88 = vadd.f32 %v86, %v87
  %v89 = vmul.f32 %v88, 0.125
  %v90 = vmul.f32 %v80, %v80
  %v91 = vsub.f32 %v89, %v90
  %v92 = vmax.f32 %v91, 0.0
  %v93 = vld [vmem:[%s3] sm:$0x1]
  %v94 = vadd.f32 %v92, 1e-05
  %v95 = vrsqrt.pop %v94
  %v96 = vmul.f32 %v95, %v94
  %v97 = vmul.f32 %v96, %v95
  %v98 = vmul.f32 0.5, %v97
  %v99 = vsub.f32 1.5, %v98
  %v100 = vmul.f32 %v95, %v99
  %vm101 = vweird.f32 %v94
  %vm102 = vweird.f32 %v95
  %vm103 = vmor %vm101, %vm102
  %v104 = vsel %vm103, %v95, %v100
  %v105 = vmul.f32 %v93, %v104
  %v106 = vld [vmem:[%s4] sm:$0x1]
  %v107 = vmul.f32 %v80, %v105
  %v108 = vsub.f32 %v106, %v107
  %v110 = vperm.slane %v105, 0
  %v112 = vmul.f32 %v71, %v110
  %v114 = vperm.slane %v108, 0
  %v116 = vadd.f32 %v112, %v114
  %v117 = vpack.c.bf16 %v116, %v116
  %v118 = vld [vmem:[%s5] sm:$0xf]
  %v119 = vld [vmem:[%s5 + $0x4] sm:$0xf]
  %v120 = vld [vmem:[%s5 + $0x8] sm:$0xf]
  %v121 = vld [vmem:[%s5 + $0xc] sm:$0xf]
  %v122 = vld [vmem:[%s5 + $0x10] sm:$0xf]
  %v123 = vld [vmem:[%s5 + $0x14] sm:$0xf]
  %v124 = vld [vmem:[%s5 + $0x18] sm:$0xf]
  %v125 = vld [vmem:[%s5 + $0x1c] sm:$0xf]
  %v126 = vld [vmem:[%s6] sm:$0x1]
  %v128 = vperm.slane %v126, 0
  %v138 = vunpack.c.l.b16 %v118
  %v139 = vunpack.c.l.b16 %v119
  %v140 = vunpack.c.l.b16 %v120
  %v141 = vunpack.c.l.b16 %v121
  %v142 = vunpack.c.l.b16 %v122
  %v143 = vunpack.c.l.b16 %v123
  %v144 = vunpack.c.l.b16 %v124
  %v145 = vunpack.c.l.b16 %v125
  %v146 = vpack.c.b16 %v139, %v138
  %v147 = vpack.c.b16 %v141, %v140
  %v148 = vpack.c.b16 %v143, %v142
  %v149 = vpack.c.b16 %v145, %v144
  %v155 = vsel %vm72, %v117, 0
  %157 = vmatpush.bf16.msra.mxu0 0
  %158 = vmatpush.bf16.msra.mxu0 0
  %159 = vmatpush.bf16.msra.mxu0 0
  %160 = vmatpush.bf16.msra.mxu0 0
  %161 = vmatpush.bf16.msra.mxu0 %v149
  %162 = vmatpush.bf16.msra.mxu0 %v148
  %163 = vmatpush.bf16.msra.mxu0 %v147
  %164 = vmatpush.bf16.msra.mxu0 %v146
  %165 = vmatmul.bf16.gmra.mxu0 %v155
  %v166 = vpop.f32.mrf.mxu0
  %v167 = vadd.f32 %v128, %v166
  %v168 = vpop.f32.mrf.mxu0
  %169 = vdwg.mxu0
  %v170 = vmax.f32 %v167, 0.0
  %v171 = vpack.c.bf16 %v170, %v170
  %v172 = vld [vmem:[%s7] sm:$0xf]
  %v173 = vld [vmem:[%s7 + $0x4] sm:$0xf]
  %v174 = vld [vmem:[%s7 + $0x8] sm:$0xf]
  %v175 = vld [vmem:[%s7 + $0xc] sm:$0xf]
  %v176 = vld [vmem:[%s8] sm:$0x1]
  %v178 = vperm.slane %v176, 0
  %v184 = vunpack.c.l.b16 %v172
  %v185 = vunpack.c.l.b16 %v173
  %v186 = vunpack.c.l.b16 %v174
  %v187 = vunpack.c.l.b16 %v175
  %v188 = vpack.c.b16 %v185, %v184
  %v189 = vpack.c.b16 %v187, %v186
  %vm192 = vcmask 261120
  %v194 = vsel %vm192, %v171, 0
  %196 = vmatpush.bf16.msra.mxu0 0
  %197 = vmatpush.bf16.msra.mxu0 0
  %198 = vmatpush.bf16.msra.mxu0 0
  %199 = vmatpush.bf16.msra.mxu0 0
  %200 = vmatpush.bf16.msra.mxu0 0
  %201 = vmatpush.bf16.msra.mxu0 0
  %202 = vmatpush.bf16.msra.mxu0 %v189
  %203 = vmatpush.bf16.msra.mxu0 %v188
  %204 = vmatmul.bf16.gmra.mxu0 %v194
  %v205 = vpop.f32.mrf.mxu0
  %v206 = vadd.f32 %v178, %v205
  %v207 = vpop.f32.mrf.mxu0
  %208 = vdwg.mxu0
  %v209 = vtanh.pop %v206
  %vm210 = vcmask 31744
  %211 = vst.msk [vmem:[%s9] sm:$0xff] %vm210, %v209
  // Predicated region
  $region38: #{tpu_custom_call.1} parent=0 // pred_check
    _
  $region39: #{tpu_custom_call.1} parent=0 // pred_check_branch
    %213 = sbr.rel (0) target = $region41
  $region40: #{tpu_custom_call.1} parent=0 // pred_region
    _
  $region41: #{tpu_custom_call.1} parent=0 // pred_fallthru
    _
  // Predicated region
  $region42: #{tpu_custom_call.1} parent=0 // pred_check
    _
  $region43: #{tpu_custom_call.1} parent=0 // pred_check_branch
    %215 = sbr.rel (0) target = $region45
  $region44: #{tpu_custom_call.1} parent=0 // pred_region
    _
  $region45: #{tpu_custom_call.1} parent=0 // pred_fallthru
    _

</llo_original>
